<compile_context>
chip_gen: v5e
topology: v5e:2x2
jax: 0.10.0
libtpu: 0.0.40
codegen_flags: <defaults>
</compile_context>

<pallas_src>
import functools

import jax
import jax.numpy as jnp
from jax.experimental import pallas as pl
from jax.experimental.pallas import tpu as pltpu

HIDDEN = 300
NEG_SLOPE = 0.01          # nn.LeakyReLU() default
LANE = 128                # TPU lane width


def _round_up(n, m):
    return (n + m - 1) // m * m


def _choose_tile_m(B):
    """Batch tile: big enough to amortize per-grid-step overhead, and >=2 grid
    steps whenever the batch allows (so v7x's two TensorCores both get work)."""
    b8 = _round_up(B, 8)
    if b8 < 128:
        return b8                       # tiny batch: single step
    if b8 <= 2048:
        return _round_up(b8 // 2, 8)    # exactly two steps
    return 1024                         # large batch: 1024-row steps, >=3 steps


def _leaky_relu(x):
    return jnp.where(x > 0, x, NEG_SLOPE * x)


def _mlp_kernel(x_ref, w1_ref, b1_ref, w2_ref, b2_ref, w3_ref, b3_ref, o_ref):
    # x arrives as f32; cast to bf16 on the VPU (halves x HBM traffic vs wrapper cast).
    x = x_ref[...].astype(jnp.bfloat16)
    # Layer 1: (TILE_M, IN_PAD)@(IN_PAD, H_PAD) on MXU, f32 accumulate.
    h = jnp.dot(x, w1_ref[...], preferred_element_type=jnp.float32)
    h = _leaky_relu(h + b1_ref[...])                       # bias + activation in f32
    # Layer 2: (TILE_M, H_PAD)@(H_PAD, H_PAD)
    h = jnp.dot(h.astype(jnp.bfloat16), w2_ref[...],
                preferred_element_type=jnp.float32)
    h = _leaky_relu(h + b2_ref[...])
    # Layer 3: (TILE_M, H_PAD)@(H_PAD, OUT_PAD)
    out = jnp.dot(h.astype(jnp.bfloat16), w3_ref[...],
                  preferred_element_type=jnp.float32) + b3_ref[...]
    o_ref[...] = out.astype(o_ref.dtype)


def prepare_params(params):
    """One-time weight preparation (keep this OUT of the per-call path).

    Accepts PyTorch-style params: w* stored as (in, out) float32, b* as (out,) or (1, out).
    Pads to lane multiples (zero padding -> numerically exact), casts matmul weights to
    bf16 once, keeps biases in f32.
    """
    w1 = jnp.asarray(params["w1"], jnp.float32)
    w2 = jnp.asarray(params["w2"], jnp.float32)
    w3 = jnp.asarray(params["w3"], jnp.float32)
    in_dim = w1.shape[0]
    out_dim = w3.shape[1]
    assert w1.shape[1] == HIDDEN and w2.shape == (HIDDEN, HIDDEN) and w3.shape[0] == HIDDEN

    in_pad = _round_up(in_dim, LANE)
    h_pad = _round_up(HIDDEN, LANE)      # 300 -> 384
    out_pad = _round_up(out_dim, LANE)

    def pad2(w, rows, cols):
        return jnp.pad(w, ((0, rows - w.shape[0]), (0, cols - w.shape[1])))

    def bias(b, n, n_pad):
        b = jnp.asarray(b, jnp.float32).reshape(1, n)     # handles (n,) and (1, n)
        return jnp.pad(b, ((0, 0), (0, n_pad - n)))

    return dict(
        w1=pad2(w1, in_pad, h_pad).astype(jnp.bfloat16),
        w2=pad2(w2, h_pad, h_pad).astype(jnp.bfloat16),
        w3=pad2(w3, h_pad, out_pad).astype(jnp.bfloat16),
        b1=bias(params["b1"], HIDDEN, h_pad),
        b2=bias(params["b2"], HIDDEN, h_pad),
        b3=bias(params["b3"], out_dim, out_pad),
    )


@functools.partial(jax.jit, static_argnames=("out_dim",))
def bottom_model_decoder(x, prepped, *, out_dim):
    """Fused forward pass of BottomModelDecoder.

    x: (B, input_dim) float32
    prepped: output of prepare_params (padded bf16 weights, padded f32 biases)
    returns: (B, out_dim) float32
    """
    B, in_dim = x.shape
    w1, b1 = prepped["w1"], prepped["b1"]
    w2, b2 = prepped["w2"], prepped["b2"]
    w3, b3 = prepped["w3"], prepped["b3"]
    in_pad, h_pad = w1.shape
    out_pad = w3.shape[1]
    assert in_pad >= in_dim and out_pad >= out_dim

    # Feature pad only when in_dim is not lane-aligned (no batch pad: Pallas masks
    # the partial last batch block's writeback itself).
    xk = x if in_pad == in_dim else jnp.pad(x, ((0, 0), (0, in_pad - in_dim)))

    tile_m = _choose_tile_m(B)
    grid = (pl.cdiv(B, tile_m),)

    # Weights/biases: constant block index -> fetched once, VMEM-resident.
    resident = lambda a: pl.BlockSpec(a.shape, lambda i: (0, 0))
    # TODO(synk): for very large in_dim on v7x (32 MiB scoped VMEM), add a K grid
    # axis for layer 1 or raise vmem_limit_bytes; not needed at these sizes.

    flops = 2 * B * (in_pad * h_pad + h_pad * h_pad + h_pad * out_pad)
    bytes_accessed = (
        xk.size * 4 + B * out_pad * 4                       # x read + out write (f32)
        + (w1.size + w2.size + w3.size) * 2                 # bf16 weights
        + (b1.size + b2.size + b3.size) * 4                 # f32 biases
    )

    out = pl.pallas_call(
        _mlp_kernel,
        out_shape=jax.ShapeDtypeStruct((B, out_pad), jnp.float32),
        grid=grid,
        in_specs=[
            pl.BlockSpec((tile_m, in_pad), lambda i: (i, 0)),   # x: tiled over batch
            resident(w1), resident(b1),
            resident(w2), resident(b2),
            resident(w3), resident(b3),
        ],
        out_specs=pl.BlockSpec((tile_m, out_pad), lambda i: (i, 0)),
        compiler_params=pltpu.CompilerParams(
            dimension_semantics=("parallel",)),                 # megacore split on v7x
        cost_estimate=pl.CostEstimate(
            flops=flops, transcendentals=0, bytes_accessed=bytes_accessed),
    )(xk, w1, b1, w2, b2, w3, b3)

    # Strip lane padding (no-op when out_dim is already a multiple of 128).
    if out_pad != out_dim:
        out = out[:, :out_dim]
    return out


def init_params(key, input_dim, output_dim):
    """Deterministic synthetic init matching nn.Linear defaults
    (W stored as (in, out), b stored PyTorch-style as (out,))."""
    ks = jax.random.split(key, 6)

    def lin(kw, kb, fan_in, fan_out):
        bound = 1.0 / jnp.sqrt(jnp.float32(fan_in))
        w = jax.random.uniform(kw, (fan_in, fan_out), jnp.float32, -bound, bound)
        b = jax.random.uniform(kb, (fan_out,), jnp.float32, -bound, bound)
        return w, b

    w1, b1 = lin(ks[0], ks[1], input_dim, HIDDEN)
    w2, b2 = lin(ks[2], ks[3], HIDDEN, HIDDEN)
    w3, b3 = lin(ks[4], ks[5], HIDDEN, output_dim)
    return dict(w1=w1, b1=b1, w2=w2, b2=b2, w3=w3, b3=b3)


def _reference(x, p):
    h = jnp.dot(x, p["w1"]) + p["b1"].reshape(1, -1)
    h = jnp.where(h > 0, h, NEG_SLOPE * h)
    h = jnp.dot(h, p["w2"]) + p["b2"].reshape(1, -1)
    h = jnp.where(h > 0, h, NEG_SLOPE * h)
    return jnp.dot(h, p["w3"]) + p["b3"].reshape(1, -1)


if __name__ == "__main__":
    key = jax.random.PRNGKey(0)
    k_x, k_p = jax.random.split(key)

    batch, input_dim, output_dim = 8, 32, 16
    x = jax.random.normal(k_x, (batch, input_dim), jnp.float32)
    params = init_params(k_p, input_dim, output_dim)
    prepped = prepare_params(params)          # one-time: pad + bf16-cast weights

    out = bottom_model_decoder(x, prepped, out_dim=output_dim)
    out = jax.block_until_ready(out)

    ref = _reference(x, params)
    assert out.shape == (batch, output_dim)
    # bf16 matmul operands -> loosened tolerance vs f32 reference.
    assert jnp.allclose(out, ref, atol=5e-2, rtol=5e-2), "mismatch vs reference"

    print("KERNEL_OK")
</pallas_src>

<mosaic_0001>
module attributes {stable_mosaic.version = 11 : i64} {
  func.func @_mlp_kernel(%arg0: i32, %arg1: memref<8x128xf32, #tpu.memory_space<vmem>>, %arg2: memref<128x384xbf16, #tpu.memory_space<vmem>>, %arg3: memref<1x384xf32, #tpu.memory_space<vmem>>, %arg4: memref<384x384xbf16, #tpu.memory_space<vmem>>, %arg5: memref<1x384xf32, #tpu.memory_space<vmem>>, %arg6: memref<384x128xbf16, #tpu.memory_space<vmem>>, %arg7: memref<1x128xf32, #tpu.memory_space<vmem>>, %arg8: memref<8x128xf32, #tpu.memory_space<vmem>>) attributes {dimension_semantics = [#tpu.dimension_semantics<parallel>], iteration_bounds = array<i64: 1>, scalar_prefetch = 0 : i64, scratch_operands = 0 : i64, tpu.core_type = #tpu.core_type<tc>, window_params = [{transform_indices = @transform_0, window_bounds = array<i64: 8, 128>}, {pipeline_mode = #tpu.pipeline_mode<synchronous>, transform_indices = @transform_1, window_bounds = array<i64: 128, 384>}, {pipeline_mode = #tpu.pipeline_mode<synchronous>, transform_indices = @transform_2, window_bounds = array<i64: 1, 384>}, {pipeline_mode = #tpu.pipeline_mode<synchronous>, transform_indices = @transform_3, window_bounds = array<i64: 384, 384>}, {pipeline_mode = #tpu.pipeline_mode<synchronous>, transform_indices = @transform_4, window_bounds = array<i64: 1, 384>}, {pipeline_mode = #tpu.pipeline_mode<synchronous>, transform_indices = @transform_5, window_bounds = array<i64: 384, 128>}, {pipeline_mode = #tpu.pipeline_mode<synchronous>, transform_indices = @transform_6, window_bounds = array<i64: 1, 128>}, {transform_indices = @transform_7, window_bounds = array<i64: 8, 128>}]} {
    %c0 = arith.constant 0 : index
    %c0_0 = arith.constant 0 : index
    %0 = vector.load %arg1[%c0, %c0_0] : memref<8x128xf32, #tpu.memory_space<vmem>>, vector<8x128xf32>
    %1 = arith.truncf %0 : vector<8x128xf32> to vector<8x128xbf16>
    %c0_1 = arith.constant 0 : index
    %c0_2 = arith.constant 0 : index
    %2 = vector.load %arg2[%c0_1, %c0_2] : memref<128x384xbf16, #tpu.memory_space<vmem>>, vector<128x384xbf16>
    %cst = arith.constant dense<0.000000e+00> : vector<8x384xf32>
    %3 = tpu.matmul %1, %2, %cst {dimension_numbers = #tpu.dot_dimension_numbers<[1], [0], [0], [1], [0, 0, 1, 1], [], []>} : vector<8x128xbf16>, vector<128x384xbf16>, vector<8x384xf32> -> vector<8x384xf32>
    %c0_3 = arith.constant 0 : index
    %c0_4 = arith.constant 0 : index
    %4 = vector.load %arg3[%c0_3, %c0_4] : memref<1x384xf32, #tpu.memory_space<vmem>>, vector<1x384xf32>
    %5 = vector.broadcast %4 : vector<1x384xf32> to vector<8x384xf32>
    %6 = arith.addf %3, %5 : vector<8x384xf32>
    %cst_5 = arith.constant 0.000000e+00 : f32
    %7 = vector.broadcast %cst_5 : f32 to vector<8x384xf32>
    %8 = arith.cmpf ogt, %6, %7 : vector<8x384xf32>
    %cst_6 = arith.constant 0.00999999977 : f32
    %9 = vector.broadcast %cst_6 : f32 to vector<8x384xf32>
    %10 = arith.mulf %9, %6 : vector<8x384xf32>
    %11 = arith.select %8, %6, %10 : vector<8x384xi1>, vector<8x384xf32>
    %12 = arith.truncf %11 : vector<8x384xf32> to vector<8x384xbf16>
    %c0_7 = arith.constant 0 : index
    %c0_8 = arith.constant 0 : index
    %13 = vector.load %arg4[%c0_7, %c0_8] : memref<384x384xbf16, #tpu.memory_space<vmem>>, vector<384x384xbf16>
    %cst_9 = arith.constant dense<0.000000e+00> : vector<8x384xf32>
    %14 = tpu.matmul %12, %13, %cst_9 {dimension_numbers = #tpu.dot_dimension_numbers<[1], [0], [0], [1], [0, 0, 1, 1], [], []>} : vector<8x384xbf16>, vector<384x384xbf16>, vector<8x384xf32> -> vector<8x384xf32>
    %c0_10 = arith.constant 0 : index
    %c0_11 = arith.constant 0 : index
    %15 = vector.load %arg5[%c0_10, %c0_11] : memref<1x384xf32, #tpu.memory_space<vmem>>, vector<1x384xf32>
    %16 = vector.broadcast %15 : vector<1x384xf32> to vector<8x384xf32>
    %17 = arith.addf %14, %16 : vector<8x384xf32>
    %cst_12 = arith.constant 0.000000e+00 : f32
    %18 = vector.broadcast %cst_12 : f32 to vector<8x384xf32>
    %19 = arith.cmpf ogt, %17, %18 : vector<8x384xf32>
    %cst_13 = arith.constant 0.00999999977 : f32
    %20 = vector.broadcast %cst_13 : f32 to vector<8x384xf32>
    %21 = arith.mulf %20, %17 : vector<8x384xf32>
    %22 = arith.select %19, %17, %21 : vector<8x384xi1>, vector<8x384xf32>
    %23 = arith.truncf %22 : vector<8x384xf32> to vector<8x384xbf16>
    %c0_14 = arith.constant 0 : index
    %c0_15 = arith.constant 0 : index
    %24 = vector.load %arg6[%c0_14, %c0_15] : memref<384x128xbf16, #tpu.memory_space<vmem>>, vector<384x128xbf16>
    %cst_16 = arith.constant dense<0.000000e+00> : vector<8x128xf32>
    %25 = tpu.matmul %23, %24, %cst_16 {dimension_numbers = #tpu.dot_dimension_numbers<[1], [0], [0], [1], [0, 0, 1, 1], [], []>} : vector<8x384xbf16>, vector<384x128xbf16>, vector<8x128xf32> -> vector<8x128xf32>
    %c0_17 = arith.constant 0 : index
    %c0_18 = arith.constant 0 : index
    %26 = vector.load %arg7[%c0_17, %c0_18] : memref<1x128xf32, #tpu.memory_space<vmem>>, vector<1x128xf32>
    %27 = vector.broadcast %26 : vector<1x128xf32> to vector<8x128xf32>
    %28 = arith.addf %25, %27 : vector<8x128xf32>
    %c0_19 = arith.constant 0 : index
    %c0_20 = arith.constant 0 : index
    %29 = vector.load %arg8[%c0_19, %c0_20] : memref<8x128xf32, #tpu.memory_space<vmem>>, vector<8x128xf32>
    tpu.vector_store %arg8[%c0_19, %c0_20], %28 {strides = array<i32>} : memref<8x128xf32, #tpu.memory_space<vmem>>, vector<8x128xf32>,
    return
  }
  func.func @transform_0(%arg0: i32) -> (i32, i32) {
    %c0_i32 = arith.constant 0 : i32
    %c0_i32_0 = arith.constant 0 : i32
    return %arg0, %c0_i32 : i32, i32
  }
  func.func @transform_1(%arg0: i32) -> (i32, i32) {
    %c0_i32 = arith.constant 0 : i32
    %c0_i32_0 = arith.constant 0 : i32
    %c0_i32_1 = arith.constant 0 : i32
    return %c0_i32, %c0_i32_0 : i32, i32
  }
  func.func @transform_2(%arg0: i32) -> (i32, i32) {
    %c0_i32 = arith.constant 0 : i32
    %c0_i32_0 = arith.constant 0 : i32
    %c0_i32_1 = arith.constant 0 : i32
    return %c0_i32, %c0_i32_0 : i32, i32
  }
  func.func @transform_3(%arg0: i32) -> (i32, i32) {
    %c0_i32 = arith.constant 0 : i32
    %c0_i32_0 = arith.constant 0 : i32
    %c0_i32_1 = arith.constant 0 : i32
    return %c0_i32, %c0_i32_0 : i32, i32
  }
  func.func @transform_4(%arg0: i32) -> (i32, i32) {
    %c0_i32 = arith.constant 0 : i32
    %c0_i32_0 = arith.constant 0 : i32
    %c0_i32_1 = arith.constant 0 : i32
    return %c0_i32, %c0_i32_0 : i32, i32
  }
  func.func @transform_5(%arg0: i32) -> (i32, i32) {
    %c0_i32 = arith.constant 0 : i32
    %c0_i32_0 = arith.constant 0 : i32
    %c0_i32_1 = arith.constant 0 : i32
    return %c0_i32, %c0_i32_0 : i32, i32
  }
  func.func @transform_6(%arg0: i32) -> (i32, i32) {
    %c0_i32 = arith.constant 0 : i32
    %c0_i32_0 = arith.constant 0 : i32
    %c0_i32_1 = arith.constant 0 : i32
    return %c0_i32, %c0_i32_0 : i32, i32
  }
  func.func @transform_7(%arg0: i32) -> (i32, i32) {
    %c0_i32 = arith.constant 0 : i32
    %c0_i32_0 = arith.constant 0 : i32
    return %arg0, %c0_i32 : i32, i32
  }
}

</mosaic_0001>

<llo_original>
// kernel: bottom_model_decoder.1
$region0: #{bottom_model_decoder.1}
  #allocation0 [shape = 'u32[]', space=smem, size = 0x4, offset = 0x4, fixed_abs, tag = 'smem constant byte address 0x4 - core index']
  #allocation1 [shape = 'u32[72,128]{1,0:T(1,128)}', space=vmem, size = 0x9000, scoped, tag = 'internal scratch']
  %s0 = inlined_call_operand.vmem [shape: f32[8,128], index: 0, kind: input, shape index: {}]
  %s1 = inlined_call_operand.hbm [shape: bf16[128,384], index: 1, kind: input, shape index: {}]
  %s2 = inlined_call_operand.vmem [shape: f32[1,384], index: 2, kind: input, shape index: {}]
  %s3 = inlined_call_operand.hbm [shape: bf16[384,384], index: 3, kind: input, shape index: {}]
  %s4 = inlined_call_operand.vmem [shape: f32[1,384], index: 4, kind: input, shape index: {}]
  %s5 = inlined_call_operand.hbm [shape: bf16[384,128], index: 5, kind: input, shape index: {}]
  %s6 = inlined_call_operand.vmem [shape: f32[1,128], index: 6, kind: input, shape index: {}]
  %s7 = inlined_call_operand.hbm [shape: f32[8,128], index: 7, kind: output, shape index: {}]
  %s8 = sld [smem:[#allocation0]]
  $region50: #{bottom_model_decoder.1} parent=0
    _
  %s10 = ssub.s32 1, %s8
  %s11 = scalar_select 0, %s10, %s8
  $region1: #{bottom_model_decoder.1} parent=0
    #allocation2 [shape = 'u8[98304]{0}', space=vmem, size = 0x18000, scoped, tag = 'input window, operand 1, single buffered']
    #allocation3 [shape = 's32[1]{0}', space=sflag, size = 0x4, scoped, tag = 'scoped memory for bottom_model_decoder.1']
    #allocation4 [shape = 's32[1]{0}', space=sflag, size = 0x4, scoped, tag = 'scoped memory for bottom_model_decoder.1']
    #allocation5 [shape = 'u8[294912]{0}', space=vmem, size = 0x48000, scoped, tag = 'input window, operand 3, single buffered']
    #allocation6 [shape = 's32[1]{0}', space=sflag, size = 0x4, scoped, tag = 'scoped memory for bottom_model_decoder.1']
    #allocation7 [shape = 'u8[98304]{0}', space=vmem, size = 0x18000, scoped, tag = 'input window, operand 5, single buffered']
    #allocation8 [shape = 'u8[4096]{0}', space=vmem, size = 0x1000, scoped, tag = 'output window, operand 0, single buffered']
    %12 = vsyncpa [#allocation3], 0
    %13 = vsyncpa [#allocation6], 0
    %14 = vsyncpa [#allocation4], 0
    // Predicated region
    $region2: #{bottom_model_decoder.1} parent=1 // pred_check
      _
    $region3: #{bottom_model_decoder.1} parent=1 // pred_check_branch
      %16 = sbr.rel (0) target = $region5
    $region4: #{bottom_model_decoder.1} parent=1 // pred_region
      _
    $region5: #{bottom_model_decoder.1} parent=1 // pred_fallthru
      _
    // Predicated region
    $region6: #{bottom_model_decoder.1} parent=1 // pred_check
      _
    $region7: #{bottom_model_decoder.1} parent=1 // pred_check_branch
      %18 = sbr.rel (0) target = $region9
    $region8: #{bottom_model_decoder.1} parent=1 // pred_region
      %20 = vsyncadd [#allocation3], 0
      %s21 = sshll.u32 %s1, 4
      %s22 = int_to_ptr.hbm [resolvable:$true] %s21
      %s23 = sshll.u32 [#allocation2], 4
      %s24 = int_to_ptr.vmem [resolvable:$true] %s23
      %29 = dma.hbm_to_vmem [thread:$0]  %s22, 3072, %s24, [#allocation3], 192, 192, 12
    $region9: #{bottom_model_decoder.1} parent=1 // pred_fallthru
      _
    // Predicated region
    $region10: #{bottom_model_decoder.1} parent=1 // pred_check
      _
    $region11: #{bottom_model_decoder.1} parent=1 // pred_check_branch
      %31 = sbr.rel (0) target = $region13
    $region12: #{bottom_model_decoder.1} parent=1 // pred_region
      _
    $region13: #{bottom_model_decoder.1} parent=1 // pred_fallthru
      _
    // Predicated region
    $region14: #{bottom_model_decoder.1} parent=1 // pred_check
      _
    $region15: #{bottom_model_decoder.1} parent=1 // pred_check_branch
      %33 = sbr.rel (0) target = $region17
    $region16: #{bottom_model_decoder.1} parent=1 // pred_region
      %35 = vsyncadd [#allocation6], 0
      %s36 = sshll.u32 %s3, 4
      %s37 = int_to_ptr.hbm [resolvable:$true] %s36
      %s38 = sshll.u32 [#allocation5], 4
      %s39 = int_to_ptr.vmem [resolvable:$true] %s38
      %44 = dma.hbm_to_vmem [thread:$0]  %s37, 9216, %s39, [#allocation6], 192, 192, 12
    $region17: #{bottom_model_decoder.1} parent=1 // pred_fallthru
      _
    // Predicated region
    $region18: #{bottom_model_decoder.1} parent=1 // pred_check
      _
    $region19: #{bottom_model_decoder.1} parent=1 // pred_check_branch
      %46 = sbr.rel (0) target = $region21
    $region20: #{bottom_model_decoder.1} parent=1 // pred_region
      _
    $region21: #{bottom_model_decoder.1} parent=1 // pred_fallthru
      _
    // Predicated region
    $region22: #{bottom_model_decoder.1} parent=1 // pred_check
      _
    $region23: #{bottom_model_decoder.1} parent=1 // pred_check_branch
      %48 = sbr.rel (0) target = $region25
    $region24: #{bottom_model_decoder.1} parent=1 // pred_region
      %50 = vsyncadd [#allocation6], 0
      %s51 = sshll.u32 %s5, 4
      %s52 = int_to_ptr.hbm [resolvable:$true] %s51
      %s53 = sshll.u32 [#allocation7], 4
      %s54 = int_to_ptr.vmem [resolvable:$true] %s53
      %59 = dma.hbm_to_vmem [thread:$0]  %s52, 3072, %s54, [#allocation6], 64, 64, 4
    $region25: #{bottom_model_decoder.1} parent=1 // pred_fallthru
      _
    // Predicated region
    $region26: #{bottom_model_decoder.1} parent=1 // pred_check
      _
    $region27: #{bottom_model_decoder.1} parent=1 // pred_check_branch
      %61 = sbr.rel (0) target = $region29
    $region28: #{bottom_model_decoder.1} parent=1 // pred_region
      _
    $region29: #{bottom_model_decoder.1} parent=1 // pred_fallthru
      _
    // Predicated region
    $region30: #{bottom_model_decoder.1} parent=1 // pred_check
      _
    $region31: #{bottom_model_decoder.1} parent=1 // pred_check_branch
      %63 = sbr.rel (0) target = $region33
    $region32: #{bottom_model_decoder.1} parent=1 // pred_region
      %65 = dma.done [#allocation3], 3072
    $region33: #{bottom_model_decoder.1} parent=1 // pred_fallthru
      _
    // Predicated region
    $region34: #{bottom_model_decoder.1} parent=1 // pred_check
      _
    $region35: #{bottom_model_decoder.1} parent=1 // pred_check_branch
      %67 = sbr.rel (0) target = $region37
    $region36: #{bottom_model_decoder.1} parent=1 // pred_region
      %69 = dma.done [#allocation6], 9216
    $region37: #{bottom_model_decoder.1} parent=1 // pred_fallthru
      _
    // Predicated region
    $region38: #{bottom_model_decoder.1} parent=1 // pred_check
      _
    $region39: #{bottom_model_decoder.1} parent=1 // pred_check_branch
      %71 = sbr.rel (0) target = $region41
    $region40: #{bottom_model_decoder.1} parent=1 // pred_region
      %73 = dma.done [#allocation6], 3072
    $region41: #{bottom_model_decoder.1} parent=1 // pred_fallthru
      _
    %v74 = vld [vmem:[%s0] sm:$0xff]
    %v75 = vpack.c.bf16 %v74, %v74
    %v76 = vld [vmem:[#allocation2] sm:$0xff]
    %v77 = vld [vmem:[#allocation2 + $0x8] sm:$0xf]
    %v78 = vld [vmem:[#allocation2 + $0xc] sm:$0xff]
    %v79 = vld [vmem:[#allocation2 + $0x14] sm:$0xf]
    %v80 = vld [vmem:[#allocation2 + $0x18] sm:$0xff]
    %v81 = vld [vmem:[#allocation2 + $0x20] sm:$0xf]
    %v82 = vld [vmem:[#allocation2 + $0x24] sm:$0xff]
    %v83 = vld [vmem:[#allocation2 + $0x2c] sm:$0xf]
    %v84 = vld [vmem:[#allocation2 + $0x30] sm:$0xff]
    %v85 = vld [vmem:[#allocation2 + $0x38] sm:$0xf]
    %v86 = vld [vmem:[#allocation2 + $0x3c] sm:$0xff]
    %v87 = vld [vmem:[#allocation2 + $0x44] sm:$0xf]
    %v88 = vld [vmem:[#allocation2 + $0x48] sm:$0xff]
    %v89 = vld [vmem:[#allocation2 + $0x50] sm:$0xf]
    %v90 = vld [vmem:[#allocation2 + $0x54] sm:$0xff]
    %v91 = vld [vmem:[#allocation2 + $0x5c] sm:$0xf]
    %v92 = vld [vmem:[#allocation2 + $0x60] sm:$0xff]
    %v93 = vld [vmem:[#allocation2 + $0x68] sm:$0xf]
    %v94 = vld [vmem:[#allocation2 + $0x6c] sm:$0xff]
    %v95 = vld [vmem:[#allocation2 + $0x74] sm:$0xf]
    %v96 = vld [vmem:[#allocation2 + $0x78] sm:$0xff]
    %v97 = vld [vmem:[#allocation2 + $0x80] sm:$0xf]
    %v98 = vld [vmem:[#allocation2 + $0x84] sm:$0xff]
    %v99 = vld [vmem:[#allocation2 + $0x8c] sm:$0xf]
    %v100 = vld [vmem:[#allocation2 + $0x90] sm:$0xff]
    %v101 = vld [vmem:[#allocation2 + $0x98] sm:$0xf]
    %v102 = vld [vmem:[#allocation2 + $0x9c] sm:$0xff]
    %v103 = vld [vmem:[#allocation2 + $0xa4] sm:$0xf]
    %v104 = vld [vmem:[#allocation2 + $0xa8] sm:$0xff]
    %v105 = vld [vmem:[#allocation2 + $0xb0] sm:$0xf]
    %v106 = vld [vmem:[#allocation2 + $0xb4] sm:$0xff]
    %v107 = vld [vmem:[#allocation2 + $0xbc] sm:$0xf]
    %v108 = vld [vmem:[%s2] sm:$0x7]
    %v110 = vperm.slane %v108, 0
    %v111 = vperm.slane %v108, 1
    %v112 = vperm.slane %v108, 2
    %v148 = vunpack.c.l.b16 %v76
    %v149 = vunpack.c.h.b16 %v76
    %v150 = vunpack.c.l.b16 %v77
    %v151 = vunpack.c.l.b16 %v78
    %v152 = vunpack.c.h.b16 %v78
    %v153 = vunpack.c.l.b16 %v79
    %v154 = vunpack.c.l.b16 %v80
    %v155 = vunpack.c.h.b16 %v80
    %v156 = vunpack.c.l.b16 %v81
    %v157 = vunpack.c.l.b16 %v82
    %v158 = vunpack.c.h.b16 %v82
    %v159 = vunpack.c.l.b16 %v83
    %v160 = vunpack.c.l.b16 %v84
    %v161 = vunpack.c.h.b16 %v84
    %v162 = vunpack.c.l.b16 %v85
    %v163 = vunpack.c.l.b16 %v86
    %v164 = vunpack.c.h.b16 %v86
    %v165 = vunpack.c.l.b16 %v87
    %v166 = vunpack.c.l.b16 %v88
    %v167 = vunpack.c.h.b16 %v88
    %v168 = vunpack.c.l.b16 %v89
    %v169 = vunpack.c.l.b16 %v90
    %v170 = vunpack.c.h.b16 %v90
    %v171 = vunpack.c.l.b16 %v91
    %v172 = vunpack.c.l.b16 %v92
    %v173 = vunpack.c.h.b16 %v92
    %v174 = vunpack.c.l.b16 %v93
    %v175 = vunpack.c.l.b16 %v94
    %v176 = vunpack.c.h.b16 %v94
    %v177 = vunpack.c.l.b16 %v95
    %v178 = vunpack.c.l.b16 %v96
    %v179 = vunpack.c.h.b16 %v96
    %v180 = vunpack.c.l.b16 %v97
    %v181 = vunpack.c.l.b16 %v98
    %v182 = vunpack.c.h.b16 %v98
    %v183 = vunpack.c.l.b16 %v99
    %v184 = vunpack.c.l.b16 %v100
    %v185 = vunpack.c.h.b16 %v100
    %v186 = vunpack.c.l.b16 %v101
    %v187 = vunpack.c.l.b16 %v102
    %v188 = vunpack.c.h.b16 %v102
    %v189 = vunpack.c.l.b16 %v103
    %v190 = vunpack.c.l.b16 %v104
    %v191 = vunpack.c.h.b16 %v104
    %v192 = vunpack.c.l.b16 %v105
    %v193 = vunpack.c.l.b16 %v106
    %v194 = vunpack.c.h.b16 %v106
    %v195 = vunpack.c.l.b16 %v107
    %v196 = vpack.c.b16 %v151, %v148
    %v197 = vpack.c.b16 %v152, %v149
    %v198 = vpack.c.b16 %v153, %v150
    %v199 = vpack.c.b16 %v157, %v154
    %v200 = vpack.c.b16 %v158, %v155
    %v201 = vpack.c.b16 %v159, %v156
    %v202 = vpack.c.b16 %v163, %v160
    %v203 = vpack.c.b16 %v164, %v161
    %v204 = vpack.c.b16 %v165, %v162
    %v205 = vpack.c.b16 %v169, %v166
    %v206 = vpack.c.b16 %v170, %v167
    %v207 = vpack.c.b16 %v171, %v168
    %v208 = vpack.c.b16 %v175, %v172
    %v209 = vpack.c.b16 %v176, %v173
    %v210 = vpack.c.b16 %v177, %v174
    %v211 = vpack.c.b16 %v181, %v178
    %v212 = vpack.c.b16 %v182, %v179
    %v213 = vpack.c.b16 %v183, %v180
    %v214 = vpack.c.b16 %v187, %v184
    %v215 = vpack.c.b16 %v188, %v185
    %v216 = vpack.c.b16 %v189, %v186
    %v217 = vpack.c.b16 %v193, %v190
    %v218 = vpack.c.b16 %v194, %v191
    %v219 = vpack.c.b16 %v195, %v192
    %244 = vmatpush.bf16.msra.mxu0 %v217
    %245 = vmatpush.bf16.msra.mxu0 %v214
    %246 = vmatpush.bf16.msra.mxu0 %v211
    %247 = vmatpush.bf16.msra.mxu0 %v208
    %248 = vmatpush.bf16.msra.mxu0 %v205
    %249 = vmatpush.bf16.msra.mxu0 %v202
    %250 = vmatpush.bf16.msra.mxu0 %v199
    %251 = vmatpush.bf16.msra.mxu0 %v196
    %252 = vmatmul.bf16.gmra.mxu0 %v75
    %v253 = vpop.f32.mrf.mxu0
    %v254 = vadd.f32 %v110, %v253
    %v255 = vpop.f32.mrf.mxu0
    %256 = vdwg.mxu0
    %257 = vmatpush.bf16.msra.mxu0 %v218
    %258 = vmatpush.bf16.msra.mxu0 %v215
    %259 = vmatpush.bf16.msra.mxu0 %v212
    %260 = vmatpush.bf16.msra.mxu0 %v209
    %261 = vmatpush.bf16.msra.mxu0 %v206
    %262 = vmatpush.bf16.msra.mxu0 %v203
    %263 = vmatpush.bf16.msra.mxu0 %v200
    %264 = vmatpush.bf16.msra.mxu0 %v197
    %265 = vmatmul.bf16.gmra.mxu0 %v75
    %v266 = vpop.f32.mrf.mxu0
    %v267 = vadd.f32 %v111, %v266
    %v268 = vpop.f32.mrf.mxu0
    %269 = vdwg.mxu0
    %270 = vmatpush.bf16.msra.mxu0 %v219
    %271 = vmatpush.bf16.msra.mxu0 %v216
    %272 = vmatpush.bf16.msra.mxu0 %v213
    %273 = vmatpush.bf16.msra.mxu0 %v210
    %274 = vmatpush.bf16.msra.mxu0 %v207
    %275 = vmatpush.bf16.msra.mxu0 %v204
    %276 = vmatpush.bf16.msra.mxu0 %v201
    %277 = vmatpush.bf16.msra.mxu0 %v198
    %278 = vmatmul.bf16.gmra.mxu0 %v75
    %v279 = vpop.f32.mrf.mxu0
    %v280 = vadd.f32 %v112, %v279
    %v281 = vpop.f32.mrf.mxu0
    %282 = vdwg.mxu0
    %vm283 = vcmp.gt.f32.partialorder %v254, 0.0
    %vm284 = vcmp.gt.f32.partialorder %v267, 0.0
    %vm285 = vcmp.gt.f32.partialorder %v280, 0.0
    %v286 = vmul.f32 %v254, 0.01
    %v287 = vmul.f32 %v267, 0.01
    %v288 = vmul.f32 %v280, 0.01
    %v289 = vsel %vm283, %v254, %v286
    %v290 = vsel %vm284, %v267, %v287
    %v291 = vsel %vm285, %v280, %v288
    %v292 = vpack.c.bf16 %v289, %v289
    %v293 = vpack.c.bf16 %v290, %v290
    %v294 = vpack.c.bf16 %v291, %v291
    %v295 = vld [vmem:[#allocation5] sm:$0xff]
    %v296 = vld [vmem:[#allocation5 + $0x8] sm:$0xf]
    %v297 = vld [vmem:[#allocation5 + $0xc] sm:$0xff]
    %v298 = vld [vmem:[#allocation5 + $0x14] sm:$0xf]
    %v299 = vld [vmem:[#allocation5 + $0x18] sm:$0xff]
    %v300 = vld [vmem:[#allocation5 + $0x20] sm:$0xf]
    %v301 = vld [vmem:[#allocation5 + $0x24] sm:$0xff]
    %v302 = vld [vmem:[#allocation5 + $0x2c] sm:$0xf]
    %v303 = vld [vmem:[#allocation5 + $0x30] sm:$0xff]
    %v304 = vld [vmem:[#allocation5 + $0x38] sm:$0xf]
    %v305 = vld [vmem:[#allocation5 + $0x3c] sm:$0xff]
    %v306 = vld [vmem:[#allocation5 + $0x44] sm:$0xf]
    %v307 = vld [vmem:[#allocation5 + $0x48] sm:$0xff]
    %v308 = vld [vmem:[#allocation5 + $0x50] sm:$0xf]
    %v309 = vld [vmem:[#allocation5 + $0x54] sm:$0xff]
    %v310 = vld [vmem:[#allocation5 + $0x5c] sm:$0xf]
    %v311 = vld [vmem:[#allocation5 + $0x60] sm:$0xff]
    %v312 = vld [vmem:[#allocation5 + $0x68] sm:$0xf]
    %v313 = vld [vmem:[#allocation5 + $0x6c] sm:$0xff]
    %v314 = vld [vmem:[#allocation5 + $0x74] sm:$0xf]
    %v315 = vld [vmem:[#allocation5 + $0x78] sm:$0xff]
    %v316 = vld [vmem:[#allocation5 + $0x80] sm:$0xf]
    %v317 = vld [vmem:[#allocation5 + $0x84] sm:$0xff]
    %v318 = vld [vmem:[#allocation5 + $0x8c] sm:$0xf]
    %v319 = vld [vmem:[#allocation5 + $0x90] sm:$0xff]
    %v320 = vld [vmem:[#allocation5 + $0x98] sm:$0xf]
    %v321 = vld [vmem:[#allocation5 + $0x9c] sm:$0xff]
    %v322 = vld [vmem:[#allocation5 + $0xa4] sm:$0xf]
    %v323 = vld [vmem:[#allocation5 + $0xa8] sm:$0xff]
    %v324 = vld [vmem:[#allocation5 + $0xb0] sm:$0xf]
    %v325 = vld [vmem:[#allocation5 + $0xb4] sm:$0xff]
    %v326 = vld [vmem:[#allocation5 + $0xbc] sm:$0xf]
    %v327 = vld [vmem:[#allocation5 + $0xc0] sm:$0xff]
    %v328 = vld [vmem:[#allocation5 + $0xc8] sm:$0xf]
    %v329 = vld [vmem:[#allocation5 + $0xcc] sm:$0xff]
    %v330 = vld [vmem:[#allocation5 + $0xd4] sm:$0xf]
    %v331 = vld [vmem:[#allocation5 + $0xd8] sm:$0xff]
    %v332 = vld [vmem:[#allocation5 + $0xe0] sm:$0xf]
    %v333 = vld [vmem:[#allocation5 + $0xe4] sm:$0xff]
    %v334 = vld [vmem:[#allocation5 + $0xec] sm:$0xf]
    %v335 = vld [vmem:[#allocation5 + $0xf0] sm:$0xff]
    %v336 = vld [vmem:[#allocation5 + $0xf8] sm:$0xf]
    %v337 = vld [vmem:[#allocation5 + $0xfc] sm:$0xff]
    %v338 = vld [vmem:[#allocation5 + $0x104] sm:$0xf]
    %v339 = vld [vmem:[#allocation5 + $0x108] sm:$0xff]
    %v340 = vld [vmem:[#allocation5 + $0x110] sm:$0xf]
    %v341 = vld [vmem:[#allocation5 + $0x114] sm:$0xff]
    %v342 = vld [vmem:[#allocation5 + $0x11c] sm:$0xf]
    %v343 = vld [vmem:[#allocation5 + $0x120] sm:$0xff]
    %v344 = vld [vmem:[#allocation5 + $0x128] sm:$0xf]
    %v345 = vld [vmem:[#allocation5 + $0x12c] sm:$0xff]
    %v346 = vld [vmem:[#allocation5 + $0x134] sm:$0xf]
    %v347 = vld [vmem:[#allocation5 + $0x138] sm:$0xff]
    %v348 = vld [vmem:[#allocation5 + $0x140] sm:$0xf]
    %v349 = vld [vmem:[#allocation5 + $0x144] sm:$0xff]
    %v350 = vld [vmem:[#allocation5 + $0x14c] sm:$0xf]
    %v351 = vld [vmem:[#allocation5 + $0x150] sm:$0xff]
    %v352 = vld [vmem:[#allocation5 + $0x158] sm:$0xf]
    %v353 = vld [vmem:[#allocation5 + $0x15c] sm:$0xff]
    %v354 = vld [vmem:[#allocation5 + $0x164] sm:$0xf]
    %v355 = vld [vmem:[#allocation5 + $0x168] sm:$0xff]
    %v356 = vld [vmem:[#allocation5 + $0x170] sm:$0xf]
    %v357 = vld [vmem:[#allocation5 + $0x174] sm:$0xff]
    %v358 = vld [vmem:[#allocation5 + $0x17c] sm:$0xf]
    %v359 = vld [vmem:[#allocation5 + $0x180] sm:$0xff]
    %v360 = vld [vmem:[#allocation5 + $0x188] sm:$0xf]
    %v361 = vld [vmem:[#allocation5 + $0x18c] sm:$0xff]
    %v362 = vld [vmem:[#allocation5 + $0x194] sm:$0xf]
    %v363 = vld [vmem:[#allocation5 + $0x198] sm:$0xff]
    %v364 = vld [vmem:[#allocation5 + $0x1a0] sm:$0xf]
    %v365 = vld [vmem:[#allocation5 + $0x1a4] sm:$0xff]
    %v366 = vld [vmem:[#allocation5 + $0x1ac] sm:$0xf]
    %v367 = vld [vmem:[#allocation5 + $0x1b0] sm:$0xff]
    %v368 = vld [vmem:[#allocation5 + $0x1b8] sm:$0xf]
    %v369 = vld [vmem:[#allocation5 + $0x1bc] sm:$0xff]
    %v370 = vld [vmem:[#allocation5 + $0x1c4] sm:$0xf]
    %v371 = vld [vmem:[#allocation5 + $0x1c8] sm:$0xff]
    %v372 = vld [vmem:[#allocation5 + $0x1d0] sm:$0xf]
    %v373 = vld [vmem:[#allocation5 + $0x1d4] sm:$0xff]
    %v374 = vld [vmem:[#allocation5 + $0x1dc] sm:$0xf]
    %v375 = vld [vmem:[#allocation5 + $0x1e0] sm:$0xff]
    %v376 = vld [vmem:[#allocation5 + $0x1e8] sm:$0xf]
    %v377 = vld [vmem:[#allocation5 + $0x1ec] sm:$0xff]
    %v378 = vld [vmem:[#allocation5 + $0x1f4] sm:$0xf]
    %v379 = vld [vmem:[#allocation5 + $0x1f8] sm:$0xff]
    %v380 = vld [vmem:[#allocation5 + $0x200] sm:$0xf]
    %v381 = vld [vmem:[#allocation5 + $0x204] sm:$0xff]
    %v382 = vld [vmem:[#allocation5 + $0x20c] sm:$0xf]
    %v383 = vld [vmem:[#allocation5 + $0x210] sm:$0xff]
    %v384 = vld [vmem:[#allocation5 + $0x218] sm:$0xf]
    %v385 = vld [vmem:[#allocation5 + $0x21c] sm:$0xff]
    %v386 = vld [vmem:[#allocation5 + $0x224] sm:$0xf]
    %v387 = vld [vmem:[#allocation5 + $0x228] sm:$0xff]
    %v388 = vld [vmem:[#allocation5 + $0x230] sm:$0xf]
    %v389 = vld [vmem:[#allocation5 + $0x234] sm:$0xff]
    %v390 = vld [vmem:[#allocation5 + $0x23c] sm:$0xf]
    %v391 = vld [vmem:[%s4] sm:$0x7]
    %v393 = vperm.slane %v391, 0
    %v394 = vperm.slane %v391, 1
    %v395 = vperm.slane %v391, 2
    %v495 = vunpack.c.l.b16 %v295
    %v496 = vunpack.c.h.b16 %v295
    %v497 = vunpack.c.l.b16 %v296
    %v498 = vunpack.c.l.b16 %v297
    %v499 = vunpack.c.h.b16 %v297
    %v500 = vunpack.c.l.b16 %v298
    %v501 = vunpack.c.l.b16 %v299
    %v502 = vunpack.c.h.b16 %v299
    %v503 = vunpack.c.l.b16 %v300
    %v504 = vunpack.c.l.b16 %v301
    %v505 = vunpack.c.h.b16 %v301
    %v506 = vunpack.c.l.b16 %v302
    %v507 = vunpack.c.l.b16 %v303
    %v508 = vunpack.c.h.b16 %v303
    %v509 = vunpack.c.l.b16 %v304
    %v510 = vunpack.c.l.b16 %v305
    %v511 = vunpack.c.h.b16 %v305
    %v512 = vunpack.c.l.b16 %v306
    %v513 = vunpack.c.l.b16 %v307
    %v514 = vunpack.c.h.b16 %v307
    %v515 = vunpack.c.l.b16 %v308
    %v516 = vunpack.c.l.b16 %v309
    %v517 = vunpack.c.h.b16 %v309
    %v518 = vunpack.c.l.b16 %v310
    %v519 = vunpack.c.l.b16 %v311
    %v520 = vunpack.c.h.b16 %v311
    %v521 = vunpack.c.l.b16 %v312
    %v522 = vunpack.c.l.b16 %v313
    %v523 = vunpack.c.h.b16 %v313
    %v524 = vunpack.c.l.b16 %v314
    %v525 = vunpack.c.l.b16 %v315
    %v526 = vunpack.c.h.b16 %v315
    %v527 = vunpack.c.l.b16 %v316
    %v528 = vunpack.c.l.b16 %v317
    %v529 = vunpack.c.h.b16 %v317
    %v530 = vunpack.c.l.b16 %v318
    %v531 = vunpack.c.l.b16 %v319
    %v532 = vunpack.c.h.b16 %v319
    %v533 = vunpack.c.l.b16 %v320
    %v534 = vunpack.c.l.b16 %v321
    %v535 = vunpack.c.h.b16 %v321
    %v536 = vunpack.c.l.b16 %v322
    %v537 = vunpack.c.l.b16 %v323
    %v538 = vunpack.c.h.b16 %v323
    %v539 = vunpack.c.l.b16 %v324
    %v540 = vunpack.c.l.b16 %v325
    %v541 = vunpack.c.h.b16 %v325
    %v542 = vunpack.c.l.b16 %v326
    %v543 = vunpack.c.l.b16 %v327
    %v544 = vunpack.c.h.b16 %v327
    %v545 = vunpack.c.l.b16 %v328
    %v546 = vunpack.c.l.b16 %v329
    %v547 = vunpack.c.h.b16 %v329
    %v548 = vunpack.c.l.b16 %v330
    %v549 = vunpack.c.l.b16 %v331
    %v550 = vunpack.c.h.b16 %v331
    %v551 = vunpack.c.l.b16 %v332
    %v552 = vunpack.c.l.b16 %v333
    %v553 = vunpack.c.h.b16 %v333
    %v554 = vunpack.c.l.b16 %v334
    %v555 = vunpack.c.l.b16 %v335
    %v556 = vunpack.c.h.b16 %v335
    %v557 = vunpack.c.l.b16 %v336
    %v558 = vunpack.c.l.b16 %v337
    %v559 = vunpack.c.h.b16 %v337
    %v560 = vunpack.c.l.b16 %v338
    %v561 = vunpack.c.l.b16 %v339
    %v562 = vunpack.c.h.b16 %v339
    %v563 = vunpack.c.l.b16 %v340
    %v564 = vunpack.c.l.b16 %v341
    %v565 = vunpack.c.h.b16 %v341
    %v566 = vunpack.c.l.b16 %v342
    %v567 = vunpack.c.l.b16 %v343
    %v568 = vunpack.c.h.b16 %v343
    %v569 = vunpack.c.l.b16 %v344
    %v570 = vunpack.c.l.b16 %v345
    %v571 = vunpack.c.h.b16 %v345
    %v572 = vunpack.c.l.b16 %v346
    %v573 = vunpack.c.l.b16 %v347
    %v574 = vunpack.c.h.b16 %v347
    %v575 = vunpack.c.l.b16 %v348
    %v576 = vunpack.c.l.b16 %v349
    %v577 = vunpack.c.h.b16 %v349
    %v578 = vunpack.c.l.b16 %v350
    %v579 = vunpack.c.l.b16 %v351
    %v580 = vunpack.c.h.b16 %v351
    %v581 = vunpack.c.l.b16 %v352
    %v582 = vunpack.c.l.b16 %v353
    %v583 = vunpack.c.h.b16 %v353
    %v584 = vunpack.c.l.b16 %v354
    %v585 = vunpack.c.l.b16 %v355
    %v586 = vunpack.c.h.b16 %v355
    %v587 = vunpack.c.l.b16 %v356
    %v588 = vunpack.c.l.b16 %v357
    %v589 = vunpack.c.h.b16 %v357
    %v590 = vunpack.c.l.b16 %v358
    %v591 = vunpack.c.l.b16 %v359
    %v592 = vunpack.c.h.b16 %v359
    %v593 = vunpack.c.l.b16 %v360
    %v594 = vunpack.c.l.b16 %v361
    %v595 = vunpack.c.h.b16 %v361
    %v596 = vunpack.c.l.b16 %v362
    %v597 = vunpack.c.l.b16 %v363
    %v598 = vunpack.c.h.b16 %v363
    %v599 = vunpack.c.l.b16 %v364
    %v600 = vunpack.c.l.b16 %v365
    %v601 = vunpack.c.h.b16 %v365
    %v602 = vunpack.c.l.b16 %v366
    %v603 = vunpack.c.l.b16 %v367
    %v604 = vunpack.c.h.b16 %v367
    %v605 = vunpack.c.l.b16 %v368
    %v606 = vunpack.c.l.b16 %v369
    %v607 = vunpack.c.h.b16 %v369
    %v608 = vunpack.c.l.b16 %v370
    %v609 = vunpack.c.l.b16 %v371
    %v610 = vunpack.c.h.b16 %v371
    %v611 = vunpack.c.l.b16 %v372
    %v612 = vunpack.c.l.b16 %v373
    %v613 = vunpack.c.h.b16 %v373
    %v614 = vunpack.c.l.b16 %v374
    %v615 = vunpack.c.l.b16 %v375
    %v616 = vunpack.c.h.b16 %v375
    %v617 = vunpack.c.l.b16 %v376
    %v618 = vunpack.c.l.b16 %v377
    %v619 = vunpack.c.h.b16 %v377
    %v620 = vunpack.c.l.b16 %v378
    %v621 = vunpack.c.l.b16 %v379
    %v622 = vunpack.c.h.b16 %v379
    %v623 = vunpack.c.l.b16 %v380
    %v624 = vunpack.c.l.b16 %v381
    %v625 = vunpack.c.h.b16 %v381
    %v626 = vunpack.c.l.b16 %v382
    %v627 = vunpack.c.l.b16 %v383
    %v628 = vunpack.c.h.b16 %v383
    %v629 = vunpack.c.l.b16 %v384
    %v630 = vunpack.c.l.b16 %v385
    %v631 = vunpack.c.h.b16 %v385
    %v632 = vunpack.c.l.b16 %v386
    %v633 = vunpack.c.l.b16 %v387
    %v634 = vunpack.c.h.b16 %v387
    %v635 = vunpack.c.l.b16 %v388
    %v636 = vunpack.c.l.b16 %v389
    %v637 = vunpack.c.h.b16 %v389
    %v638 = vunpack.c.l.b16 %v390
    %v639 = vpack.c.b16 %v498, %v495
    %v640 = vpack.c.b16 %v499, %v496
    %v641 = vpack.c.b16 %v500, %v497
    %v642 = vpack.c.b16 %v504, %v501
    %v643 = vpack.c.b16 %v505, %v502
    %v644 = vpack.c.b16 %v506, %v503
    %v645 = vpack.c.b16 %v510, %v507
    %v646 = vpack.c.b16 %v511, %v508
    %v647 = vpack.c.b16 %v512, %v509
    %v648 = vpack.c.b16 %v516, %v513
    %v649 = vpack.c.b16 %v517, %v514
    %v650 = vpack.c.b16 %v518, %v515
    %v651 = vpack.c.b16 %v522, %v519
    %v652 = vpack.c.b16 %v523, %v520
    %v653 = vpack.c.b16 %v524, %v521
    %v654 = vpack.c.b16 %v528, %v525
    %v655 = vpack.c.b16 %v529, %v526
    %v656 = vpack.c.b16 %v530, %v527
    %v657 = vpack.c.b16 %v534, %v531
    %v658 = vpack.c.b16 %v535, %v532
    %v659 = vpack.c.b16 %v536, %v533
    %v660 = vpack.c.b16 %v540, %v537
    %v661 = vpack.c.b16 %v541, %v538
    %v662 = vpack.c.b16 %v542, %v539
    %v663 = vpack.c.b16 %v546, %v543
    %v664 = vpack.c.b16 %v547, %v544
    %v665 = vpack.c.b16 %v548, %v545
    %v666 = vpack.c.b16 %v552, %v549
    %v667 = vpack.c.b16 %v553, %v550
    %v668 = vpack.c.b16 %v554, %v551
    %v669 = vpack.c.b16 %v558, %v555
    %v670 = vpack.c.b16 %v559, %v556
    %v671 = vpack.c.b16 %v560, %v557
    %v672 = vpack.c.b16 %v564, %v561
    %v673 = vpack.c.b16 %v565, %v562
    %v674 = vpack.c.b16 %v566, %v563
    %v675 = vpack.c.b16 %v570, %v567
    %v676 = vpack.c.b16 %v571, %v568
    %v677 = vpack.c.b16 %v572, %v569
    %v678 = vpack.c.b16 %v576, %v573
    %v679 = vpack.c.b16 %v577, %v574
    %v680 = vpack.c.b16 %v578, %v575
    %v681 = vpack.c.b16 %v582, %v579
    %v682 = vpack.c.b16 %v583, %v580
    %v683 = vpack.c.b16 %v584, %v581
    %v684 = vpack.c.b16 %v588, %v585
    %v685 = vpack.c.b16 %v589, %v586
    %v686 = vpack.c.b16 %v590, %v587
    %v687 = vpack.c.b16 %v594, %v591
    %v688 = vpack.c.b16 %v595, %v592
    %v689 = vpack.c.b16 %v596, %v593
    %v690 = vpack.c.b16 %v600, %v597
    %v691 = vpack.c.b16 %v601, %v598
    %v692 = vpack.c.b16 %v602, %v599
    %v693 = vpack.c.b16 %v606, %v603
    %v694 = vpack.c.b16 %v607, %v604
    %v695 = vpack.c.b16 %v608, %v605
    %v696 = vpack.c.b16 %v612, %v609
    %v697 = vpack.c.b16 %v613, %v610
    %v698 = vpack.c.b16 %v614, %v611
    %v699 = vpack.c.b16 %v618, %v615
    %v700 = vpack.c.b16 %v619, %v616
    %v701 = vpack.c.b16 %v620, %v617
    %v702 = vpack.c.b16 %v624, %v621
    %v703 = vpack.c.b16 %v625, %v622
    %v704 = vpack.c.b16 %v626, %v623
    %v705 = vpack.c.b16 %v630, %v627
    %v706 = vpack.c.b16 %v631, %v628
    %v707 = vpack.c.b16 %v632, %v629
    %v708 = vpack.c.b16 %v636, %v633
    %v709 = vpack.c.b16 %v637, %v634
    %v710 = vpack.c.b16 %v638, %v635
    %783 = vmatpush.bf16.msra.mxu0 %v660
    %784 = vmatpush.bf16.msra.mxu0 %v657
    %785 = vmatpush.bf16.msra.mxu0 %v654
    %786 = vmatpush.bf16.msra.mxu0 %v651
    %787 = vmatpush.bf16.msra.mxu0 %v648
    %788 = vmatpush.bf16.msra.mxu0 %v645
    %789 = vmatpush.bf16.msra.mxu0 %v642
    %790 = vmatpush.bf16.msra.mxu0 %v639
    %791 = vmatmul.bf16.gmra.mxu0 %v292
    %v792 = vpop.f32.mrf.mxu0
    %v793 = vadd.f32 %v393, %v792
    %v794 = vpop.f32.mrf.mxu0
    %795 = vdwg.mxu0
    %796 = vmatpush.bf16.msra.mxu0 %v684
    %797 = vmatpush.bf16.msra.mxu0 %v681
    %798 = vmatpush.bf16.msra.mxu0 %v678
    %799 = vmatpush.bf16.msra.mxu0 %v675
    %800 = vmatpush.bf16.msra.mxu0 %v672
    %801 = vmatpush.bf16.msra.mxu0 %v669
    %802 = vmatpush.bf16.msra.mxu0 %v666
    %803 = vmatpush.bf16.msra.mxu0 %v663
    %804 = vmatmul.bf16.gmra.mxu0 %v293
    %v805 = vpop.f32.mrf.mxu0
    %v806 = vadd.f32 %v793, %v805
    %v807 = vpop.f32.mrf.mxu0
    %808 = vdwg.mxu0
    %809 = vmatpush.bf16.msra.mxu0 %v708
    %810 = vmatpush.bf16.msra.mxu0 %v705
    %811 = vmatpush.bf16.msra.mxu0 %v702
    %812 = vmatpush.bf16.msra.mxu0 %v699
    %813 = vmatpush.bf16.msra.mxu0 %v696
    %814 = vmatpush.bf16.msra.mxu0 %v693
    %815 = vmatpush.bf16.msra.mxu0 %v690
    %816 = vmatpush.bf16.msra.mxu0 %v687
    %817 = vmatmul.bf16.gmra.mxu0 %v294
    %v818 = vpop.f32.mrf.mxu0
    %v819 = vadd.f32 %v806, %v818
    %v820 = vpop.f32.mrf.mxu0
    %821 = vdwg.mxu0
    %822 = vmatpush.bf16.msra.mxu0 %v661
    %823 = vmatpush.bf16.msra.mxu0 %v658
    %824 = vmatpush.bf16.msra.mxu0 %v655
    %825 = vmatpush.bf16.msra.mxu0 %v652
    %826 = vmatpush.bf16.msra.mxu0 %v649
    %827 = vmatpush.bf16.msra.mxu0 %v646
    %828 = vmatpush.bf16.msra.mxu0 %v643
    %829 = vmatpush.bf16.msra.mxu0 %v640
    %830 = vmatmul.bf16.gmra.mxu0 %v292
    %v831 = vpop.f32.mrf.mxu0
    %v832 = vadd.f32 %v394, %v831
    %v833 = vpop.f32.mrf.mxu0
    %834 = vdwg.mxu0
    %835 = vmatpush.bf16.msra.mxu0 %v685
    %836 = vmatpush.bf16.msra.mxu0 %v682
    %837 = vmatpush.bf16.msra.mxu0 %v679
    %838 = vmatpush.bf16.msra.mxu0 %v676
    %839 = vmatpush.bf16.msra.mxu0 %v673
    %840 = vmatpush.bf16.msra.mxu0 %v670
    %841 = vmatpush.bf16.msra.mxu0 %v667
    %842 = vmatpush.bf16.msra.mxu0 %v664
    %843 = vmatmul.bf16.gmra.mxu0 %v293
    %v844 = vpop.f32.mrf.mxu0
    %v845 = vadd.f32 %v832, %v844
    %v846 = vpop.f32.mrf.mxu0
    %847 = vdwg.mxu0
    %848 = vmatpush.bf16.msra.mxu0 %v709
    %849 = vmatpush.bf16.msra.mxu0 %v706
    %850 = vmatpush.bf16.msra.mxu0 %v703
    %851 = vmatpush.bf16.msra.mxu0 %v700
    %852 = vmatpush.bf16.msra.mxu0 %v697
    %853 = vmatpush.bf16.msra.mxu0 %v694
    %854 = vmatpush.bf16.msra.mxu0 %v691
    %855 = vmatpush.bf16.msra.mxu0 %v688
    %856 = vmatmul.bf16.gmra.mxu0 %v294
    %v857 = vpop.f32.mrf.mxu0
    %v858 = vadd.f32 %v845, %v857
    %v859 = vpop.f32.mrf.mxu0
    %860 = vdwg.mxu0
    %861 = vmatpush.bf16.msra.mxu0 %v662
    %862 = vmatpush.bf16.msra.mxu0 %v659
    %863 = vmatpush.bf16.msra.mxu0 %v656
    %864 = vmatpush.bf16.msra.mxu0 %v653
    %865 = vmatpush.bf16.msra.mxu0 %v650
    %866 = vmatpush.bf16.msra.mxu0 %v647
    %867 = vmatpush.bf16.msra.mxu0 %v644
    %868 = vmatpush.bf16.msra.mxu0 %v641
    %869 = vmatmul.bf16.gmra.mxu0 %v292
    %v870 = vpop.f32.mrf.mxu0
    %v871 = vadd.f32 %v395, %v870
    %v872 = vpop.f32.mrf.mxu0
    %873 = vdwg.mxu0
    %874 = vmatpush.bf16.msra.mxu0 %v686
    %875 = vmatpush.bf16.msra.mxu0 %v683
    %876 = vmatpush.bf16.msra.mxu0 %v680
    %877 = vmatpush.bf16.msra.mxu0 %v677
    %878 = vmatpush.bf16.msra.mxu0 %v674
    %879 = vmatpush.bf16.msra.mxu0 %v671
    %880 = vmatpush.bf16.msra.mxu0 %v668
    %881 = vmatpush.bf16.msra.mxu0 %v665
    %882 = vmatmul.bf16.gmra.mxu0 %v293
    %v883 = vpop.f32.mrf.mxu0
    %v884 = vadd.f32 %v871, %v883
    %v885 = vpop.f32.mrf.mxu0
    %886 = vdwg.mxu0
    %887 = vmatpush.bf16.msra.mxu0 %v710
    %888 = vmatpush.bf16.msra.mxu0 %v707
    %889 = vmatpush.bf16.msra.mxu0 %v704
    %890 = vmatpush.bf16.msra.mxu0 %v701
    %891 = vmatpush.bf16.msra.mxu0 %v698
    %892 = vmatpush.bf16.msra.mxu0 %v695
    %893 = vmatpush.bf16.msra.mxu0 %v692
    %894 = vmatpush.bf16.msra.mxu0 %v689
    %895 = vmatmul.bf16.gmra.mxu0 %v294
    %v896 = vpop.f32.mrf.mxu0
    %v897 = vadd.f32 %v884, %v896
    %v898 = vpop.f32.mrf.mxu0
    %899 = vdwg.mxu0
    %vm900 = vcmp.gt.f32.partialorder %v819, 0.0
    %vm901 = vcmp.gt.f32.partialorder %v858, 0.0
    %vm902 = vcmp.gt.f32.partialorder %v897, 0.0
    %v903 = vmul.f32 %v819, 0.01
    %v904 = vmul.f32 %v858, 0.01
    %v905 = vmul.f32 %v897, 0.01
    %v906 = vsel %vm900, %v819, %v903
    %v907 = vsel %vm901, %v858, %v904
    %v908 = vsel %vm902, %v897, %v905
    %v909 = vpack.c.bf16 %v906, %v906
    %v910 = vpack.c.bf16 %v907, %v907
    %v911 = vpack.c.bf16 %v908, %v908
    %v912 = vld [vmem:[#allocation7] sm:$0xf]
    %v913 = vld [vmem:[#allocation7 + $0x4] sm:$0xf]
    %v914 = vld [vmem:[#allocation7 + $0x8] sm:$0xf]
    %v915 = vld [vmem:[#allocation7 + $0xc] sm:$0xf]
    %v916 = vld [vmem:[#allocation7 + $0x10] sm:$0xf]
    %v917 = vld [vmem:[#allocation7 + $0x14] sm:$0xf]
    %v918 = vld [vmem:[#allocation7 + $0x18] sm:$0xf]
    %v919 = vld [vmem:[#allocation7 + $0x1c] sm:$0xf]
    %v920 = vld [vmem:[#allocation7 + $0x20] sm:$0xf]
    %v921 = vld [vmem:[#allocation7 + $0x24] sm:$0xf]
    %v922 = vld [vmem:[#allocation7 + $0x28] sm:$0xf]
    %v923 = vld [vmem:[#allocation7 + $0x2c] sm:$0xf]
    %v924 = vld [vmem:[#allocation7 + $0x30] sm:$0xf]
    %v925 = vld [vmem:[#allocation7 + $0x34] sm:$0xf]
    %v926 = vld [vmem:[#allocation7 + $0x38] sm:$0xf]
    %v927 = vld [vmem:[#allocation7 + $0x3c] sm:$0xf]
    %v928 = vld [vmem:[#allocation7 + $0x40] sm:$0xf]
    %v929 = vld [vmem:[#allocation7 + $0x44] sm:$0xf]
    %v930 = vld [vmem:[#allocation7 + $0x48] sm:$0xf]
    %v931 = vld [vmem:[#allocation7 + $0x4c] sm:$0xf]
    %v932 = vld [vmem:[#allocation7 + $0x50] sm:$0xf]
    %v933 = vld [vmem:[#allocation7 + $0x54] sm:$0xf]
    %v934 = vld [vmem:[#allocation7 + $0x58] sm:$0xf]
    %v935 = vld [vmem:[#allocation7 + $0x5c] sm:$0xf]
    %v936 = vld [vmem:[#allocation7 + $0x60] sm:$0xf]
    %v937 = vld [vmem:[#allocation7 + $0x64] sm:$0xf]
    %v938 = vld [vmem:[#allocation7 + $0x68] sm:$0xf]
    %v939 = vld [vmem:[#allocation7 + $0x6c] sm:$0xf]
    %v940 = vld [vmem:[#allocation7 + $0x70] sm:$0xf]
    %v941 = vld [vmem:[#allocation7 + $0x74] sm:$0xf]
    %v942 = vld [vmem:[#allocation7 + $0x78] sm:$0xf]
    %v943 = vld [vmem:[#allocation7 + $0x7c] sm:$0xf]
    %v944 = vld [vmem:[#allocation7 + $0x80] sm:$0xf]
    %v945 = vld [vmem:[#allocation7 + $0x84] sm:$0xf]
    %v946 = vld [vmem:[#allocation7 + $0x88] sm:$0xf]
    %v947 = vld [vmem:[#allocation7 + $0x8c] sm:$0xf]
    %v948 = vld [vmem:[#allocation7 + $0x90] sm:$0xf]
    %v949 = vld [vmem:[#allocation7 + $0x94] sm:$0xf]
    %v950 = vld [vmem:[#allocation7 + $0x98] sm:$0xf]
    %v951 = vld [vmem:[#allocation7 + $0x9c] sm:$0xf]
    %v952 = vld [vmem:[#allocation7 + $0xa0] sm:$0xf]
    %v953 = vld [vmem:[#allocation7 + $0xa4] sm:$0xf]
    %v954 = vld [vmem:[#allocation7 + $0xa8] sm:$0xf]
    %v955 = vld [vmem:[#allocation7 + $0xac] sm:$0xf]
    %v956 = vld [vmem:[#allocation7 + $0xb0] sm:$0xf]
    %v957 = vld [vmem:[#allocation7 + $0xb4] sm:$0xf]
    %v958 = vld [vmem:[#allocation7 + $0xb8] sm:$0xf]
    %v959 = vld [vmem:[#allocation7 + $0xbc] sm:$0xf]
    %v960 = vld [vmem:[%s6] sm:$0x1]
    %v962 = vperm.slane %v960, 0
    %v1012 = vunpack.c.l.b16 %v912
    %v1013 = vunpack.c.l.b16 %v913
    %v1014 = vunpack.c.l.b16 %v914
    %v1015 = vunpack.c.l.b16 %v915
    %v1016 = vunpack.c.l.b16 %v916
    %v1017 = vunpack.c.l.b16 %v917
    %v1018 = vunpack.c.l.b16 %v918
    %v1019 = vunpack.c.l.b16 %v919
    %v1020 = vunpack.c.l.b16 %v920
    %v1021 = vunpack.c.l.b16 %v921
    %v1022 = vunpack.c.l.b16 %v922
    %v1023 = vunpack.c.l.b16 %v923
    %v1024 = vunpack.c.l.b16 %v924
    %v1025 = vunpack.c.l.b16 %v925
    %v1026 = vunpack.c.l.b16 %v926
    %v1027 = vunpack.c.l.b16 %v927
    %v1028 = vunpack.c.l.b16 %v928
    %v1029 = vunpack.c.l.b16 %v929
    %v1030 = vunpack.c.l.b16 %v930
    %v1031 = vunpack.c.l.b16 %v931
    %v1032 = vunpack.c.l.b16 %v932
    %v1033 = vunpack.c.l.b16 %v933
    %v1034 = vunpack.c.l.b16 %v934
    %v1035 = vunpack.c.l.b16 %v935
    %v1036 = vunpack.c.l.b16 %v936
    %v1037 = vunpack.c.l.b16 %v937
    %v1038 = vunpack.c.l.b16 %v938
    %v1039 = vunpack.c.l.b16 %v939
    %v1040 = vunpack.c.l.b16 %v940
    %v1041 = vunpack.c.l.b16 %v941
    %v1042 = vunpack.c.l.b16 %v942
    %v1043 = vunpack.c.l.b16 %v943
    %v1044 = vunpack.c.l.b16 %v944
    %v1045 = vunpack.c.l.b16 %v945
    %v1046 = vunpack.c.l.b16 %v946
    %v1047 = vunpack.c.l.b16 %v947
    %v1048 = vunpack.c.l.b16 %v948
    %v1049 = vunpack.c.l.b16 %v949
    %v1050 = vunpack.c.l.b16 %v950
    %v1051 = vunpack.c.l.b16 %v951
    %v1052 = vunpack.c.l.b16 %v952
    %v1053 = vunpack.c.l.b16 %v953
    %v1054 = vunpack.c.l.b16 %v954
    %v1055 = vunpack.c.l.b16 %v955
    %v1056 = vunpack.c.l.b16 %v956
    %v1057 = vunpack.c.l.b16 %v957
    %v1058 = vunpack.c.l.b16 %v958
    %v1059 = vunpack.c.l.b16 %v959
    %v1060 = vpack.c.b16 %v1013, %v1012
    %v1061 = vpack.c.b16 %v1015, %v1014
    %v1062 = vpack.c.b16 %v1017, %v1016
    %v1063 = vpack.c.b16 %v1019, %v1018
    %v1064 = vpack.c.b16 %v1021, %v1020
    %v1065 = vpack.c.b16 %v1023, %v1022
    %v1066 = vpack.c.b16 %v1025, %v1024
    %v1067 = vpack.c.b16 %v1027, %v1026
    %v1068 = vpack.c.b16 %v1029, %v1028
    %v1069 = vpack.c.b16 %v1031, %v1030
    %v1070 = vpack.c.b16 %v1033, %v1032
    %v1071 = vpack.c.b16 %v1035, %v1034
    %v1072 = vpack.c.b16 %v1037, %v1036
    %v1073 = vpack.c.b16 %v1039, %v1038
    %v1074 = vpack.c.b16 %v1041, %v1040
    %v1075 = vpack.c.b16 %v1043, %v1042
    %v1076 = vpack.c.b16 %v1045, %v1044
    %v1077 = vpack.c.b16 %v1047, %v1046
    %v1078 = vpack.c.b16 %v1049, %v1048
    %v1079 = vpack.c.b16 %v1051, %v1050
    %v1080 = vpack.c.b16 %v1053, %v1052
    %v1081 = vpack.c.b16 %v1055, %v1054
    %v1082 = vpack.c.b16 %v1057, %v1056
    %v1083 = vpack.c.b16 %v1059, %v1058
    %1108 = vmatpush.bf16.msra.mxu0 %v1067
    %1109 = vmatpush.bf16.msra.mxu0 %v1066
    %1110 = vmatpush.bf16.msra.mxu0 %v1065
    %1111 = vmatpush.bf16.msra.mxu0 %v1064
    %1112 = vmatpush.bf16.msra.mxu0 %v1063
    %1113 = vmatpush.bf16.msra.mxu0 %v1062
    %1114 = vmatpush.bf16.msra.mxu0 %v1061
    %1115 = vmatpush.bf16.msra.mxu0 %v1060
    %1116 = vmatmul.bf16.gmra.mxu0 %v909
    %v1117 = vpop.f32.mrf.mxu0
    %v1118 = vadd.f32 %v962, %v1117
    %v1119 = vpop.f32.mrf.mxu0
    %1120 = vdwg.mxu0
    %1121 = vmatpush.bf16.msra.mxu0 %v1075
    %1122 = vmatpush.bf16.msra.mxu0 %v1074
    %1123 = vmatpush.bf16.msra.mxu0 %v1073
    %1124 = vmatpush.bf16.msra.mxu0 %v1072
    %1125 = vmatpush.bf16.msra.mxu0 %v1071
    %1126 = vmatpush.bf16.msra.mxu0 %v1070
    %1127 = vmatpush.bf16.msra.mxu0 %v1069
    %1128 = vmatpush.bf16.msra.mxu0 %v1068
    %1129 = vmatmul.bf16.gmra.mxu0 %v910
    %v1130 = vpop.f32.mrf.mxu0
    %v1131 = vadd.f32 %v1118, %v1130
    %v1132 = vpop.f32.mrf.mxu0
    %1133 = vdwg.mxu0
    %1134 = vmatpush.bf16.msra.mxu0 %v1083
    %1135 = vmatpush.bf16.msra.mxu0 %v1082
    %1136 = vmatpush.bf16.msra.mxu0 %v1081
    %1137 = vmatpush.bf16.msra.mxu0 %v1080
    %1138 = vmatpush.bf16.msra.mxu0 %v1079
    %1139 = vmatpush.bf16.msra.mxu0 %v1078
    %1140 = vmatpush.bf16.msra.mxu0 %v1077
    %1141 = vmatpush.bf16.msra.mxu0 %v1076
    %1142 = vmatmul.bf16.gmra.mxu0 %v911
    %v1143 = vpop.f32.mrf.mxu0
    %v1144 = vadd.f32 %v1131, %v1143
    %v1145 = vpop.f32.mrf.mxu0
    %1146 = vdwg.mxu0
    %1147 = vst [vmem:[#allocation8] sm:$0xff] %v1144
    // Predicated region
    $region42: #{bottom_model_decoder.1} parent=1 // pred_check
      _
    $region43: #{bottom_model_decoder.1} parent=1 // pred_check_branch
      %1149 = sbr.rel (0) target = $region45
    $region44: #{bottom_model_decoder.1} parent=1 // pred_region
      %1151 = vsyncadd [#allocation4], 0
      %s1153 = sshll.u32 [#allocation8], 4
      %s1154 = int_to_ptr.vmem [resolvable:$true] %s1153
      %s1155 = sshll.u32 %s7, 4
      %s1156 = int_to_ptr.hbm [resolvable:$true] %s1155
      %1158 = dma.vmem_to_hbm [thread:$0]  %s1154, 128, %s1156, [#allocation4]
    $region45: #{bottom_model_decoder.1} parent=1 // pred_fallthru
      _
    // Predicated region
    $region46: #{bottom_model_decoder.1} parent=1 // pred_check
      _
    $region47: #{bottom_model_decoder.1} parent=1 // pred_check_branch
      %1160 = sbr.rel (0) target = $region49
    $region48: #{bottom_model_decoder.1} parent=1 // pred_region
      %1162 = dma.done [#allocation4], 128
    $region49: #{bottom_model_decoder.1} parent=1 // pred_fallthru
      _
    %1163 = vsyncpa [#allocation3], 1
    %1164 = vsyncpa [#allocation6], 1
    %1165 = vsyncpa [#allocation4], 1

</llo_original>
